<compile_context>
chip_gen: v6e
topology: v6e:2x2x1
jax: 0.10.0
libtpu: 0.0.40
codegen_flags: <defaults>
</compile_context>

<pallas_src>
import math

import jax
import jax.numpy as jnp
from jax.experimental import pallas as pl
from jax.experimental.pallas import tpu as pltpu


def _round_up(n, m):
    return ((n + m - 1) // m) * m


def fc_body_with_action_kernel(x_ref, a_ref, w1x_ref, w1a_ref, b1_ref,
                               w2_ref, b2_ref, out_ref):
    # Layer 0: split contraction (no concat) + bias + ReLU, f32 accumulation.
    h = jnp.dot(x_ref[...], w1x_ref[...], preferred_element_type=jnp.float32)
    h = h + jnp.dot(a_ref[...], w1a_ref[...], preferred_element_type=jnp.float32)
    h = jnp.maximum(h + b1_ref[...], 0.0)

    # Layer 1: Linear + bias + ReLU, written straight to the unpadded output.
    o = jnp.dot(h, w2_ref[...], preferred_element_type=jnp.float32) + b2_ref[...]
    out_ref[...] = jnp.maximum(o, 0.0).astype(out_ref.dtype)


def _pick_batch_tile(batch, block_batch, min_steps=4):
    """Batch tile: multiple of 8 (sublanes), capped at block_batch, and sized
    so medium batches still produce >= min_steps grid steps (keeps both v7x
    TensorCores fed via the "parallel" axis and lets each core pipeline)."""
    if batch <= 8:
        return batch                       # single step; block == full dim is legal
    tb = _round_up(pl.cdiv(batch, min_steps), 8)
    return max(8, min(tb, block_batch))


def prepare_params(params, state_dim):
    """Hoisted, one-time parameter prep: split w1 into state/action halves so
    the per-call forward path does no XLA slicing.  params = (w1, b1, w2, b2)
    with w_i shape (in, out), b_i shape (1, out)."""
    w1, b1, w2, b2 = params
    w1x = jnp.asarray(w1[:state_dim])
    w1a = jnp.asarray(w1[state_dim:])
    return (w1x, w1a, b1, w2, b2)


def fc_body_with_action(x, action, prepared_params, *, block_batch=4096):
    """prepared_params = prepare_params((w1, b1, w2, b2), state_dim)."""
    w1x, w1a, b1, w2, b2 = prepared_params
    batch, state_dim = x.shape
    action_dim = action.shape[1]
    h0 = w1x.shape[1]
    feature_dim = w2.shape[1]

    tb = _pick_batch_tile(batch, block_batch)
    grid = (pl.cdiv(batch, tb),)

    row_spec = lambda f: pl.BlockSpec((tb, f), lambda i: (i, 0))
    const_spec = lambda r, c: pl.BlockSpec((r, c), lambda i: (0, 0))

    flops = 2 * batch * ((state_dim + action_dim) * h0 + h0 * feature_dim)
    bytes_accessed = 4 * (x.size + action.size + w1x.size + w1a.size
                          + b1.size + w2.size + b2.size + batch * feature_dim)

    return pl.pallas_call(
        fc_body_with_action_kernel,
        out_shape=jax.ShapeDtypeStruct((batch, feature_dim), jnp.float32),
        grid=grid,
        in_specs=[
            row_spec(state_dim),          # x tile         (pipelined over batch)
            row_spec(action_dim),         # action tile    (pipelined over batch)
            const_spec(state_dim, h0),    # w1[:state_dim] (VMEM resident)
            const_spec(action_dim, h0),   # w1[state_dim:] (VMEM resident)
            const_spec(1, h0),            # b1             (VMEM resident)
            const_spec(h0, feature_dim),  # w2             (VMEM resident)
            const_spec(1, feature_dim),   # b2             (VMEM resident)
        ],
        out_specs=row_spec(feature_dim),  # unpadded: last block dim == full dim
        compiler_params=pltpu.CompilerParams(
            dimension_semantics=("parallel",),
            vmem_limit_bytes=32 * 1024 * 1024),
        cost_estimate=pl.CostEstimate(
            flops=flops, transcendentals=0, bytes_accessed=bytes_accessed),
    )(x, action, w1x, w1a, b1, w2, b2)


def init_params(key, state_dim, action_dim, hidden_units=(32, 16), agents=1, w_scale=1.0):
    """Kaiming-normal weights (fan_in, gain=sqrt(2)), zero biases; (in, out) layout."""
    dims = list(hidden_units)
    in_dims = [(state_dim + action_dim) * agents] + dims[:-1]
    out_dims = dims
    params = []
    for fan_in, fan_out in zip(in_dims, out_dims):
        key, sub = jax.random.split(key)
        std = math.sqrt(2.0 / fan_in)
        w = jax.random.normal(sub, (fan_in, fan_out), dtype=jnp.float32) * std * w_scale
        b = jnp.zeros((1, fan_out), dtype=jnp.float32)
        params.extend([w, b])
    return tuple(params)


def reference_forward(x, action, params):
    w1, b1, w2, b2 = params
    h = jnp.maximum(jnp.concatenate([x, action], axis=1) @ w1 + b1, 0.0)
    return jnp.maximum(h @ w2 + b2, 0.0)


if __name__ == "__main__":
    # Small shapes consistent with the module: batch=2, state_dim=16,
    # action_dim=8, hidden_units=(32, 16), agents=1.
    batch, state_dim, action_dim = 2, 16, 8
    hidden_units = (32, 16)

    key = jax.random.PRNGKey(0)
    kx, ka, kp, kxb, kab = jax.random.split(key, 5)
    x = jax.random.normal(kx, (batch, state_dim), dtype=jnp.float32)
    action = jax.random.normal(ka, (batch, action_dim), dtype=jnp.float32)
    params = init_params(kp, state_dim, action_dim, hidden_units)
    prepped = prepare_params(params, state_dim)   # one-time, outside forward path

    out = jax.block_until_ready(fc_body_with_action(x, action, prepped))
    ref = reference_forward(x, action, params)
    assert out.shape == (batch, hidden_units[-1])
    assert jnp.allclose(out, ref, atol=1e-5, rtol=1e-5)

    # Larger batch exercises the pipelined multi-step grid path: tb=256 ->
    # grid=(4,), so both v7x TensorCores get work and each core still
    # double-buffers the row streams; weights stay VMEM-resident across steps.
    big = 1024
    xb = jax.random.normal(kxb, (big, state_dim), dtype=jnp.float32)
    ab = jax.random.normal(kab, (big, action_dim), dtype=jnp.float32)
    outb = jax.block_until_ready(fc_body_with_action(xb, ab, prepped))
    refb = reference_forward(xb, ab, params)
    assert outb.shape == (big, hidden_units[-1])
    assert jnp.allclose(outb, refb, atol=1e-4, rtol=1e-4)

    # Non-multiple-of-tile batch: partial last tile's out-of-range rows are
    # dropped by the blocked output spec, so results stay exact.
    odd = 100
    xo = jax.random.normal(kx, (odd, state_dim), dtype=jnp.float32)
    ao = jax.random.normal(ka, (odd, action_dim), dtype=jnp.float32)
    outo = jax.block_until_ready(fc_body_with_action(xo, ao, prepped))
    refo = reference_forward(xo, ao, params)
    assert outo.shape == (odd, hidden_units[-1])
    assert jnp.allclose(outo, refo, atol=1e-4, rtol=1e-4)

    print("KERNEL_OK")
</pallas_src>

<mosaic_0001>
module attributes {stable_mosaic.version = 11 : i64} {
  func.func @fc_body_with_action_kernel(%arg0: i32, %arg1: memref<2x16xf32, #tpu.memory_space<vmem>>, %arg2: memref<2x8xf32, #tpu.memory_space<vmem>>, %arg3: memref<16x32xf32, #tpu.memory_space<vmem>>, %arg4: memref<8x32xf32, #tpu.memory_space<vmem>>, %arg5: memref<1x32xf32, #tpu.memory_space<vmem>>, %arg6: memref<32x16xf32, #tpu.memory_space<vmem>>, %arg7: memref<1x16xf32, #tpu.memory_space<vmem>>, %arg8: memref<2x16xf32, #tpu.memory_space<vmem>>) attributes {dimension_semantics = [#tpu.dimension_semantics<parallel>], iteration_bounds = array<i64: 1>, scalar_prefetch = 0 : i64, scratch_operands = 0 : i64, tpu.core_type = #tpu.core_type<tc>, window_params = [{transform_indices = @transform_0, window_bounds = array<i64: 2, 16>}, {transform_indices = @transform_1, window_bounds = array<i64: 2, 8>}, {pipeline_mode = #tpu.pipeline_mode<synchronous>, transform_indices = @transform_2, window_bounds = array<i64: 16, 32>}, {pipeline_mode = #tpu.pipeline_mode<synchronous>, transform_indices = @transform_3, window_bounds = array<i64: 8, 32>}, {pipeline_mode = #tpu.pipeline_mode<synchronous>, transform_indices = @transform_4, window_bounds = array<i64: 1, 32>}, {pipeline_mode = #tpu.pipeline_mode<synchronous>, transform_indices = @transform_5, window_bounds = array<i64: 32, 16>}, {pipeline_mode = #tpu.pipeline_mode<synchronous>, transform_indices = @transform_6, window_bounds = array<i64: 1, 16>}, {transform_indices = @transform_7, window_bounds = array<i64: 2, 16>}]} {
    %c0 = arith.constant 0 : index
    %c0_0 = arith.constant 0 : index
    %0 = vector.load %arg1[%c0, %c0_0] : memref<2x16xf32, #tpu.memory_space<vmem>>, vector<2x16xf32>
    %c0_1 = arith.constant 0 : index
    %c0_2 = arith.constant 0 : index
    %1 = vector.load %arg3[%c0_1, %c0_2] : memref<16x32xf32, #tpu.memory_space<vmem>>, vector<16x32xf32>
    %cst = arith.constant dense<0.000000e+00> : vector<2x32xf32>
    %2 = tpu.matmul %0, %1, %cst {dimension_numbers = #tpu.dot_dimension_numbers<[1], [0], [0], [1], [0, 0, 1, 1], [], []>} : vector<2x16xf32>, vector<16x32xf32>, vector<2x32xf32> -> vector<2x32xf32>
    %c0_3 = arith.constant 0 : index
    %c0_4 = arith.constant 0 : index
    %3 = vector.load %arg2[%c0_3, %c0_4] : memref<2x8xf32, #tpu.memory_space<vmem>>, vector<2x8xf32>
    %c0_5 = arith.constant 0 : index
    %c0_6 = arith.constant 0 : index
    %4 = vector.load %arg4[%c0_5, %c0_6] : memref<8x32xf32, #tpu.memory_space<vmem>>, vector<8x32xf32>
    %cst_7 = arith.constant dense<0.000000e+00> : vector<2x32xf32>
    %5 = tpu.matmul %3, %4, %cst_7 {dimension_numbers = #tpu.dot_dimension_numbers<[1], [0], [0], [1], [0, 0, 1, 1], [], []>} : vector<2x8xf32>, vector<8x32xf32>, vector<2x32xf32> -> vector<2x32xf32>
    %6 = arith.addf %2, %5 : vector<2x32xf32>
    %c0_8 = arith.constant 0 : index
    %c0_9 = arith.constant 0 : index
    %7 = vector.load %arg5[%c0_8, %c0_9] : memref<1x32xf32, #tpu.memory_space<vmem>>, vector<1x32xf32>
    %8 = vector.broadcast %7 : vector<1x32xf32> to vector<2x32xf32>
    %9 = arith.addf %6, %8 : vector<2x32xf32>
    %cst_10 = arith.constant 0.000000e+00 : f32
    %10 = vector.broadcast %cst_10 : f32 to vector<2x32xf32>
    %11 = arith.maximumf %9, %10 : vector<2x32xf32>
    %c0_11 = arith.constant 0 : index
    %c0_12 = arith.constant 0 : index
    %12 = vector.load %arg6[%c0_11, %c0_12] : memref<32x16xf32, #tpu.memory_space<vmem>>, vector<32x16xf32>
    %cst_13 = arith.constant dense<0.000000e+00> : vector<2x16xf32>
    %13 = tpu.matmul %11, %12, %cst_13 {dimension_numbers = #tpu.dot_dimension_numbers<[1], [0], [0], [1], [0, 0, 1, 1], [], []>} : vector<2x32xf32>, vector<32x16xf32>, vector<2x16xf32> -> vector<2x16xf32>
    %c0_14 = arith.constant 0 : index
    %c0_15 = arith.constant 0 : index
    %14 = vector.load %arg7[%c0_14, %c0_15] : memref<1x16xf32, #tpu.memory_space<vmem>>, vector<1x16xf32>
    %15 = vector.broadcast %14 : vector<1x16xf32> to vector<2x16xf32>
    %16 = arith.addf %13, %15 : vector<2x16xf32>
    %cst_16 = arith.constant 0.000000e+00 : f32
    %17 = vector.broadcast %cst_16 : f32 to vector<2x16xf32>
    %18 = arith.maximumf %16, %17 : vector<2x16xf32>
    %c0_17 = arith.constant 0 : index
    %c0_18 = arith.constant 0 : index
    %19 = vector.load %arg8[%c0_17, %c0_18] : memref<2x16xf32, #tpu.memory_space<vmem>>, vector<2x16xf32>
    tpu.vector_store %arg8[%c0_17, %c0_18], %18 {strides = array<i32>} : memref<2x16xf32, #tpu.memory_space<vmem>>, vector<2x16xf32>,
    return
  }
  func.func @transform_0(%arg0: i32) -> (i32, i32) {
    %c0_i32 = arith.constant 0 : i32
    %c0_i32_0 = arith.constant 0 : i32
    return %arg0, %c0_i32 : i32, i32
  }
  func.func @transform_1(%arg0: i32) -> (i32, i32) {
    %c0_i32 = arith.constant 0 : i32
    %c0_i32_0 = arith.constant 0 : i32
    return %arg0, %c0_i32 : i32, i32
  }
  func.func @transform_2(%arg0: i32) -> (i32, i32) {
    %c0_i32 = arith.constant 0 : i32
    %c0_i32_0 = arith.constant 0 : i32
    %c0_i32_1 = arith.constant 0 : i32
    return %c0_i32, %c0_i32_0 : i32, i32
  }
  func.func @transform_3(%arg0: i32) -> (i32, i32) {
    %c0_i32 = arith.constant 0 : i32
    %c0_i32_0 = arith.constant 0 : i32
    %c0_i32_1 = arith.constant 0 : i32
    return %c0_i32, %c0_i32_0 : i32, i32
  }
  func.func @transform_4(%arg0: i32) -> (i32, i32) {
    %c0_i32 = arith.constant 0 : i32
    %c0_i32_0 = arith.constant 0 : i32
    %c0_i32_1 = arith.constant 0 : i32
    return %c0_i32, %c0_i32_0 : i32, i32
  }
  func.func @transform_5(%arg0: i32) -> (i32, i32) {
    %c0_i32 = arith.constant 0 : i32
    %c0_i32_0 = arith.constant 0 : i32
    %c0_i32_1 = arith.constant 0 : i32
    return %c0_i32, %c0_i32_0 : i32, i32
  }
  func.func @transform_6(%arg0: i32) -> (i32, i32) {
    %c0_i32 = arith.constant 0 : i32
    %c0_i32_0 = arith.constant 0 : i32
    %c0_i32_1 = arith.constant 0 : i32
    return %c0_i32, %c0_i32_0 : i32, i32
  }
  func.func @transform_7(%arg0: i32) -> (i32, i32) {
    %c0_i32 = arith.constant 0 : i32
    %c0_i32_0 = arith.constant 0 : i32
    return %arg0, %c0_i32 : i32, i32
  }
}

</mosaic_0001>

<llo_original>
// kernel: tpu_custom_call.1
$region0: #{tpu_custom_call.1}
  #allocation0 [shape = 'u32[]', space=smem, size = 0x4, offset = 0x4, fixed_abs, tag = 'smem constant byte address 0x4 - core index']
  #allocation1 [shape = 'u32[144,128]{1,0:T(1,128)}', space=vmem, size = 0x12000, scoped, tag = 'internal scratch']
  %s0 = inlined_call_operand.vmem [shape: f32[2,16], index: 0, kind: input, shape index: {}]
  %s1 = inlined_call_operand.vmem [shape: f32[2,8], index: 1, kind: input, shape index: {}]
  %s2 = inlined_call_operand.vmem [shape: f32[16,32], index: 2, kind: input, shape index: {}]
  %s3 = inlined_call_operand.vmem [shape: f32[8,32], index: 3, kind: input, shape index: {}]
  %s4 = inlined_call_operand.vmem [shape: f32[1,32], index: 4, kind: input, shape index: {}]
  %s5 = inlined_call_operand.vmem [shape: f32[32,16], index: 5, kind: input, shape index: {}]
  %s6 = inlined_call_operand.vmem [shape: f32[1,16], index: 6, kind: input, shape index: {}]
  %s7 = inlined_call_operand.hbm [shape: f32[2,16], index: 7, kind: output, shape index: {}]
  %s8 = sld [smem:[#allocation0]]
  $region38: #{tpu_custom_call.1} parent=0
    _
  %s10 = ssub.s32 1, %s8
  %s11 = scalar_select 0, %s10, %s8
  $region1: #{tpu_custom_call.1} parent=0
    #allocation2 [shape = 'u8[1024]{0}', space=vmem, size = 0x400, scoped, tag = 'output window, operand 0, single buffered']
    #allocation3 [shape = 's32[1]{0}', space=sflag, size = 0x4, scoped, tag = 'scoped memory for tpu_custom_call.1']
    %12 = vsyncpa [#allocation3], 0
    // Predicated region
    $region2: #{tpu_custom_call.1} parent=1 // pred_check
      _
    $region3: #{tpu_custom_call.1} parent=1 // pred_check_branch
      %14 = sbr.rel (0) target = $region5
    $region4: #{tpu_custom_call.1} parent=1 // pred_region
      _
    $region5: #{tpu_custom_call.1} parent=1 // pred_fallthru
      _
    // Predicated region
    $region6: #{tpu_custom_call.1} parent=1 // pred_check
      _
    $region7: #{tpu_custom_call.1} parent=1 // pred_check_branch
      %16 = sbr.rel (0) target = $region9
    $region8: #{tpu_custom_call.1} parent=1 // pred_region
      _
    $region9: #{tpu_custom_call.1} parent=1 // pred_fallthru
      _
    // Predicated region
    $region10: #{tpu_custom_call.1} parent=1 // pred_check
      _
    $region11: #{tpu_custom_call.1} parent=1 // pred_check_branch
      %18 = sbr.rel (0) target = $region13
    $region12: #{tpu_custom_call.1} parent=1 // pred_region
      _
    $region13: #{tpu_custom_call.1} parent=1 // pred_fallthru
      _
    // Predicated region
    $region14: #{tpu_custom_call.1} parent=1 // pred_check
      _
    $region15: #{tpu_custom_call.1} parent=1 // pred_check_branch
      %20 = sbr.rel (0) target = $region17
    $region16: #{tpu_custom_call.1} parent=1 // pred_region
      _
    $region17: #{tpu_custom_call.1} parent=1 // pred_fallthru
      _
    // Predicated region
    $region18: #{tpu_custom_call.1} parent=1 // pred_check
      _
    $region19: #{tpu_custom_call.1} parent=1 // pred_check_branch
      %22 = sbr.rel (0) target = $region21
    $region20: #{tpu_custom_call.1} parent=1 // pred_region
      _
    $region21: #{tpu_custom_call.1} parent=1 // pred_fallthru
      _
    // Predicated region
    $region22: #{tpu_custom_call.1} parent=1 // pred_check
      _
    $region23: #{tpu_custom_call.1} parent=1 // pred_check_branch
      %24 = sbr.rel (0) target = $region25
    $region24: #{tpu_custom_call.1} parent=1 // pred_region
      _
    $region25: #{tpu_custom_call.1} parent=1 // pred_fallthru
      _
    // Predicated region
    $region26: #{tpu_custom_call.1} parent=1 // pred_check
      _
    $region27: #{tpu_custom_call.1} parent=1 // pred_check_branch
      %26 = sbr.rel (0) target = $region29
    $region28: #{tpu_custom_call.1} parent=1 // pred_region
      _
    $region29: #{tpu_custom_call.1} parent=1 // pred_fallthru
      _
    %v27 = vld [vmem:[%s0] sm:$0x3]
    %v28 = vld [vmem:[%s2] sm:$0xff]
    %v29 = vld [vmem:[%s2 + $0x8] sm:$0xff]
    %v30 = vld [vmem:[%s1] sm:$0x3]
    %v31 = vld [vmem:[%s3] sm:$0xff]
    %vm32 = vcmask 64512
    %v34 = vsel %vm32, %v30, 0
    %36 = vmatprep.subr.mxu0 0.0
    %37 = vmatpush1.msra.mxu0 0.0
    %38 = vmatprep.subr.mxu0 0.0
    %39 = vmatpush1.msra.mxu0 0.0
    %40 = vmatprep.subr.mxu0 0.0
    %41 = vmatpush1.msra.mxu0 0.0
    %42 = vmatprep.subr.mxu0 0.0
    %43 = vmatpush1.msra.mxu0 0.0
    %44 = vmatprep.subr.mxu0 0.0
    %45 = vmatpush1.msra.mxu0 0.0
    %46 = vmatprep.subr.mxu0 0.0
    %47 = vmatpush1.msra.mxu0 0.0
    %48 = vmatprep.subr.mxu0 0.0
    %49 = vmatpush1.msra.mxu0 0.0
    %50 = vmatprep.subr.mxu0 0.0
    %51 = vmatpush1.msra.mxu0 0.0
    %52 = vmatprep.subr.mxu0 0.0
    %53 = vmatpush1.msra.mxu0 0.0
    %54 = vmatprep.subr.mxu0 0.0
    %55 = vmatpush1.msra.mxu0 0.0
    %56 = vmatprep.subr.mxu0 0.0
    %57 = vmatpush1.msra.mxu0 0.0
    %58 = vmatprep.subr.mxu0 0.0
    %59 = vmatpush1.msra.mxu0 0.0
    %60 = vmatprep.subr.mxu0 0.0
    %61 = vmatpush1.msra.mxu0 0.0
    %62 = vmatprep.subr.mxu0 0.0
    %63 = vmatpush1.msra.mxu0 0.0
    %64 = vmatprep.subr.mxu0 0.0
    %65 = vmatpush1.msra.mxu0 0.0
    %66 = vmatprep.subr.mxu0 0.0
    %67 = vmatpush1.msra.mxu0 %v31
    %68 = vmatprep.subr.mxu0 0.0
    %69 = vmatpush2.msra.mxu0 0.0
    %70 = vmatprep.subr.mxu0 0.0
    %71 = vmatpush2.msra.mxu0 0.0
    %72 = vmatprep.subr.mxu0 0.0
    %73 = vmatpush2.msra.mxu0 0.0
    %74 = vmatprep.subr.mxu0 0.0
    %75 = vmatpush2.msra.mxu0 0.0
    %76 = vmatprep.subr.mxu0 0.0
    %77 = vmatpush2.msra.mxu0 0.0
    %78 = vmatprep.subr.mxu0 0.0
    %79 = vmatpush2.msra.mxu0 0.0
    %80 = vmatprep.subr.mxu0 0.0
    %81 = vmatpush2.msra.mxu0 0.0
    %82 = vmatprep.subr.mxu0 0.0
    %83 = vmatpush2.msra.mxu0 0.0
    %84 = vmatprep.subr.mxu0 0.0
    %85 = vmatpush2.msra.mxu0 0.0
    %86 = vmatprep.subr.mxu0 0.0
    %87 = vmatpush2.msra.mxu0 0.0
    %88 = vmatprep.subr.mxu0 0.0
    %89 = vmatpush2.msra.mxu0 0.0
    %90 = vmatprep.subr.mxu0 0.0
    %91 = vmatpush2.msra.mxu0 0.0
    %92 = vmatprep.subr.mxu0 0.0
    %93 = vmatpush2.msra.mxu0 0.0
    %94 = vmatprep.subr.mxu0 0.0
    %95 = vmatpush2.msra.mxu0 0.0
    %96 = vmatprep.subr.mxu0 0.0
    %97 = vmatpush2.msra.mxu0 0.0
    %98 = vmatprep.subr.mxu0 0.0
    %99 = vmatpush2.msra.mxu0 0.0
    %100 = vmatprep.mubr.f32.mxu0 0.0
    %101 = vmatmul.mubr.f32.gmra.mxu0 %v34
    %v102 = vpop.f32.mrf.mxu0
    %v103 = vadd.f32 0.0, %v102
    %v104 = vpop.f32.mrf.mxu0
    %105 = vdwg.mxu0
    %vm106 = vcmask 130048
    %v108 = vsel %vm106, %v27, 0
    %110 = vmatprep.subr.mxu0 0.0
    %111 = vmatpush1.msra.mxu0 0.0
    %112 = vmatprep.subr.mxu0 0.0
    %113 = vmatpush1.msra.mxu0 0.0
    %114 = vmatprep.subr.mxu0 0.0
    %115 = vmatpush1.msra.mxu0 0.0
    %116 = vmatprep.subr.mxu0 0.0
    %117 = vmatpush1.msra.mxu0 0.0
    %118 = vmatprep.subr.mxu0 0.0
    %119 = vmatpush1.msra.mxu0 0.0
    %120 = vmatprep.subr.mxu0 0.0
    %121 = vmatpush1.msra.mxu0 0.0
    %122 = vmatprep.subr.mxu0 0.0
    %123 = vmatpush1.msra.mxu0 0.0
    %124 = vmatprep.subr.mxu0 0.0
    %125 = vmatpush1.msra.mxu0 0.0
    %126 = vmatprep.subr.mxu0 0.0
    %127 = vmatpush1.msra.mxu0 0.0
    %128 = vmatprep.subr.mxu0 0.0
    %129 = vmatpush1.msra.mxu0 0.0
    %130 = vmatprep.subr.mxu0 0.0
    %131 = vmatpush1.msra.mxu0 0.0
    %132 = vmatprep.subr.mxu0 0.0
    %133 = vmatpush1.msra.mxu0 0.0
    %134 = vmatprep.subr.mxu0 0.0
    %135 = vmatpush1.msra.mxu0 0.0
    %136 = vmatprep.subr.mxu0 0.0
    %137 = vmatpush1.msra.mxu0 0.0
    %138 = vmatprep.subr.mxu0 0.0
    %139 = vmatpush1.msra.mxu0 %v29
    %140 = vmatprep.subr.mxu0 0.0
    %141 = vmatpush1.msra.mxu0 %v28
    %142 = vmatprep.subr.mxu0 0.0
    %143 = vmatpush2.msra.mxu0 0.0
    %144 = vmatprep.subr.mxu0 0.0
    %145 = vmatpush2.msra.mxu0 0.0
    %146 = vmatprep.subr.mxu0 0.0
    %147 = vmatpush2.msra.mxu0 0.0
    %148 = vmatprep.subr.mxu0 0.0
    %149 = vmatpush2.msra.mxu0 0.0
    %150 = vmatprep.subr.mxu0 0.0
    %151 = vmatpush2.msra.mxu0 0.0
    %152 = vmatprep.subr.mxu0 0.0
    %153 = vmatpush2.msra.mxu0 0.0
    %154 = vmatprep.subr.mxu0 0.0
    %155 = vmatpush2.msra.mxu0 0.0
    %156 = vmatprep.subr.mxu0 0.0
    %157 = vmatpush2.msra.mxu0 0.0
    %158 = vmatprep.subr.mxu0 0.0
    %159 = vmatpush2.msra.mxu0 0.0
    %160 = vmatprep.subr.mxu0 0.0
    %161 = vmatpush2.msra.mxu0 0.0
    %162 = vmatprep.subr.mxu0 0.0
    %163 = vmatpush2.msra.mxu0 0.0
    %164 = vmatprep.subr.mxu0 0.0
    %165 = vmatpush2.msra.mxu0 0.0
    %166 = vmatprep.subr.mxu0 0.0
    %167 = vmatpush2.msra.mxu0 0.0
    %168 = vmatprep.subr.mxu0 0.0
    %169 = vmatpush2.msra.mxu0 0.0
    %170 = vmatprep.subr.mxu0 0.0
    %171 = vmatpush2.msra.mxu0 0.0
    %172 = vmatprep.subr.mxu0 0.0
    %173 = vmatpush2.msra.mxu0 0.0
    %174 = vmatprep.mubr.f32.mxu0 0.0
    %175 = vmatmul.mubr.f32.gmra.mxu0 %v108
    %v176 = vpop.f32.mrf.mxu0
    %v177 = vadd.f32 %v103, %v176
    %v178 = vpop.f32.mrf.mxu0
    %179 = vdwg.mxu0
    %v180 = vld [vmem:[%s4] sm:$0x1]
    %v182 = vlaneseq
    %v183 = vshrl.u32 %v182, 7
    %v184 = vsub.s32 0, %v183
    %v185 = vrot.slane %v180, %v184
    %v187 = vadd.f32 %v177, %v185
    %v188 = vmax.f32 %v187, 0.0
    %v189 = vld [vmem:[%s5] sm:$0xff]
    %v190 = vld [vmem:[%s5 + $0x8] sm:$0xff]
    %v191 = vld [vmem:[%s5 + $0x10] sm:$0xff]
    %v192 = vld [vmem:[%s5 + $0x18] sm:$0xff]
    %v193 = vld [vmem:[%s6] sm:$0x1]
    %v195 = vlaneseq
    %v196 = vshrl.u32 %v195, 7
    %v197 = vsub.s32 0, %v196
    %v198 = vrot.slane %v193, %v197
    %vm200 = vcmask 261120
    %v202 = vsel %vm200, %v188, 0
    %204 = vmatprep.subr.mxu0 0.0
    %205 = vmatpush1.msra.mxu0 0.0
    %206 = vmatprep.subr.mxu0 0.0
    %207 = vmatpush1.msra.mxu0 0.0
    %208 = vmatprep.subr.mxu0 0.0
    %209 = vmatpush1.msra.mxu0 0.0
    %210 = vmatprep.subr.mxu0 0.0
    %211 = vmatpush1.msra.mxu0 0.0
    %212 = vmatprep.subr.mxu0 0.0
    %213 = vmatpush1.msra.mxu0 0.0
    %214 = vmatprep.subr.mxu0 0.0
    %215 = vmatpush1.msra.mxu0 0.0
    %216 = vmatprep.subr.mxu0 0.0
    %217 = vmatpush1.msra.mxu0 0.0
    %218 = vmatprep.subr.mxu0 0.0
    %219 = vmatpush1.msra.mxu0 0.0
    %220 = vmatprep.subr.mxu0 0.0
    %221 = vmatpush1.msra.mxu0 0.0
    %222 = vmatprep.subr.mxu0 0.0
    %223 = vmatpush1.msra.mxu0 0.0
    %224 = vmatprep.subr.mxu0 0.0
    %225 = vmatpush1.msra.mxu0 0.0
    %226 = vmatprep.subr.mxu0 0.0
    %227 = vmatpush1.msra.mxu0 0.0
    %228 = vmatprep.subr.mxu0 0.0
    %229 = vmatpush1.msra.mxu0 %v192
    %230 = vmatprep.subr.mxu0 0.0
    %231 = vmatpush1.msra.mxu0 %v191
    %232 = vmatprep.subr.mxu0 0.0
    %233 = vmatpush1.msra.mxu0 %v190
    %234 = vmatprep.subr.mxu0 0.0
    %235 = vmatpush1.msra.mxu0 %v189
    %236 = vmatprep.subr.mxu0 0.0
    %237 = vmatpush2.msra.mxu0 0.0
    %238 = vmatprep.subr.mxu0 0.0
    %239 = vmatpush2.msra.mxu0 0.0
    %240 = vmatprep.subr.mxu0 0.0
    %241 = vmatpush2.msra.mxu0 0.0
    %242 = vmatprep.subr.mxu0 0.0
    %243 = vmatpush2.msra.mxu0 0.0
    %244 = vmatprep.subr.mxu0 0.0
    %245 = vmatpush2.msra.mxu0 0.0
    %246 = vmatprep.subr.mxu0 0.0
    %247 = vmatpush2.msra.mxu0 0.0
    %248 = vmatprep.subr.mxu0 0.0
    %249 = vmatpush2.msra.mxu0 0.0
    %250 = vmatprep.subr.mxu0 0.0
    %251 = vmatpush2.msra.mxu0 0.0
    %252 = vmatprep.subr.mxu0 0.0
    %253 = vmatpush2.msra.mxu0 0.0
    %254 = vmatprep.subr.mxu0 0.0
    %255 = vmatpush2.msra.mxu0 0.0
    %256 = vmatprep.subr.mxu0 0.0
    %257 = vmatpush2.msra.mxu0 0.0
    %258 = vmatprep.subr.mxu0 0.0
    %259 = vmatpush2.msra.mxu0 0.0
    %260 = vmatprep.subr.mxu0 0.0
    %261 = vmatpush2.msra.mxu0 0.0
    %262 = vmatprep.subr.mxu0 0.0
    %263 = vmatpush2.msra.mxu0 0.0
    %264 = vmatprep.subr.mxu0 0.0
    %265 = vmatpush2.msra.mxu0 0.0
    %266 = vmatprep.subr.mxu0 0.0
    %267 = vmatpush2.msra.mxu0 0.0
    %268 = vmatprep.mubr.f32.mxu0 0.0
    %269 = vmatmul.mubr.f32.gmra.mxu0 %v202
    %v270 = vpop.f32.mrf.mxu0
    %v271 = vadd.f32 %v198, %v270
    %v272 = vpop.f32.mrf.mxu0
    %273 = vdwg.mxu0
    %v274 = vmax.f32 %v271, 0.0
    %vm275 = vcmask 123904
    %276 = vst.msk [vmem:[#allocation2] sm:$0x3] %vm275, %v274
    // Predicated region
    $region30: #{tpu_custom_call.1} parent=1 // pred_check
      _
    $region31: #{tpu_custom_call.1} parent=1 // pred_check_branch
      %278 = sbr.rel (0) target = $region33
    $region32: #{tpu_custom_call.1} parent=1 // pred_region
      %s280 = ssub.s32 32, 32
      %281 = vsyncadd [#allocation3], %s280
      %s283 = sshll.u32 [#allocation2], 4
      %s284 = int_to_ptr.vmem [resolvable:$true] %s283
      %286 = dma.vmem_to_hbm [thread:$0]  %s284, 32, %s7, [#allocation3]
    $region33: #{tpu_custom_call.1} parent=1 // pred_fallthru
      _
    // Predicated region
    $region34: #{tpu_custom_call.1} parent=1 // pred_check
      _
    $region35: #{tpu_custom_call.1} parent=1 // pred_check_branch
      %288 = sbr.rel (0) target = $region37
    $region36: #{tpu_custom_call.1} parent=1 // pred_region
      %289 = dma.done [#allocation3], 32
    $region37: #{tpu_custom_call.1} parent=1 // pred_fallthru
      _
    %290 = vsyncpa [#allocation3], 1

</llo_original>
